<compile_context>
chip_gen: v5e
topology: v5e:2x2
jax: 0.10.0
libtpu: 0.0.40
codegen_flags: <defaults>
</compile_context>

<pallas_src>
import numpy as np
import jax
import jax.numpy as jnp
from jax.experimental import pallas as pl
from jax.experimental.pallas import tpu as pltpu


# ---------------------------------------------------------------------------
# Fused kernel: [reflect-pad -> 3x3 conv (3 row-tap matmuls) -> BN -> ReLU] x 2
# ---------------------------------------------------------------------------
def _make_conv_block_kernel(N, H, W, Cin, C1, C2):
    """Build the fused kernel for fixed static shapes (closure over Python ints)."""

    def stage(a, cin, cout, t_ref, s_ref, b_ref, out_dtype):
        # a: (N, H, W*cin) bf16, lane-dense activation slab.
        # ---- reflect pad (PyTorch 'reflect': mirror WITHOUT repeating the edge) ----
        left = a[:, :, cin:2 * cin]                       # column w = 1
        right = a[:, :, (W - 2) * cin:(W - 1) * cin]      # column w = W-2
        ap = jnp.concatenate([left, a, right], axis=2)    # (N, H, (W+2)*cin)
        ap = jnp.concatenate([ap[:, 1:2], ap, ap[:, H - 2:H - 1]], axis=1)  # (N, H+2, .)

        # ---- 3 row-tap matmuls against block-Toeplitz weights, f32 accumulate ----
        # LHS per tap is a contiguous padded-row slab: no im2col shuffles needed.
        kdim = (W + 2) * cin
        acc = jnp.dot(ap[:, 0:H].reshape(N * H, kdim), t_ref[0],
                      preferred_element_type=jnp.float32)
        for kh in (1, 2):
            acc = acc + jnp.dot(ap[:, kh:kh + H].reshape(N * H, kdim), t_ref[kh],
                                preferred_element_type=jnp.float32)

        # ---- fused BatchNorm (eval stats) + ReLU; Dropout2d = identity in eval ----
        y = jnp.maximum(acc * s_ref[...] + b_ref[...], 0.0)
        return y.astype(out_dtype).reshape(N, H, W * cout)

    def kernel(x_ref, t1_ref, s1_ref, b1_ref, t2_ref, s2_ref, b2_ref, o_ref):
        xb = x_ref[...].astype(jnp.bfloat16)              # cast before any relayout
        h1 = stage(xb, Cin, C1, t1_ref, s1_ref, b1_ref, jnp.bfloat16)   # stays in VMEM
        h2 = stage(h1, C1, C2, t2_ref, s2_ref, b2_ref, o_ref.dtype)
        o_ref[...] = h2                                   # lane-dense (N, H, W*C2) store

    return kernel


# ---------------------------------------------------------------------------
# Wrappers
# ---------------------------------------------------------------------------
def conv_block_nhwc(x_nhwc, t1, s1, b1, t2, s2, b2):
    """x_nhwc: (N, H, W, Cin) f32.  Returns (N, H, W, C2) f32."""
    N, H, W, Cin = x_nhwc.shape
    assert H >= 2 and W >= 2, "reflect padding needs H, W >= 2"
    C1 = t1.shape[2] // W
    C2 = t2.shape[2] // W

    x_slab = x_nhwc.reshape(N, H, W * Cin)     # lane-dense input slab (free reshape)
    kernel = _make_conv_block_kernel(N, H, W, Cin, C1, C2)

    out = pl.pallas_call(
        kernel,
        out_shape=jax.ShapeDtypeStruct((N, H, W * C2), jnp.float32),
        # No grid: whole (tiny) batch in one step.  All operands are whole-array VMEM
        # blocks -> no per-step overhead and no double buffering of constants.
        in_specs=[pl.BlockSpec(memory_space=pltpu.MemorySpace.VMEM)] * 7,
        out_specs=pl.BlockSpec(memory_space=pltpu.MemorySpace.VMEM),
        # TODO(synk): at production resolutions add an H-strip "parallel" grid axis
        # (2-row halo) and set pltpu.CompilerParams(vmem_limit_bytes=...) for v7x.
    )(x_slab, t1, s1, b1, t2, s2, b2)
    return out.reshape(N, H, W, C2)


@jax.jit
def conv_block_forward_nchw(x_nchw, t1, s1, b1, t2, s2, b2):
    # Single layout boundary with the PyTorch-style NCHW world.
    x = jnp.transpose(x_nchw, (0, 2, 3, 1)).astype(jnp.float32)
    y = conv_block_nhwc(x, t1, s1, b1, t2, s2, b2)
    return jnp.transpose(y, (0, 3, 1, 2))


# ---------------------------------------------------------------------------
# Parameters (deterministic synthetic; BN folded; block-Toeplitz conv weights)
# ---------------------------------------------------------------------------
def make_conv_block_params(key, in_channel, out_channel, W, eps=1e-5):
    ks = jax.random.split(key, 10)

    def one_stage(kw_, kg, kb, km, kv, cin, cout):
        # PyTorch Conv2d weight layout: (Cout, Cin, 3, 3)
        w = jax.random.normal(kw_, (cout, cin, 3, 3), jnp.float32) * 0.1
        gamma = 1.0 + 0.1 * jax.random.normal(kg, (cout,), jnp.float32)
        beta = 0.1 * jax.random.normal(kb, (cout,), jnp.float32)
        rmean = 0.1 * jax.random.normal(km, (cout,), jnp.float32)
        rvar = jnp.abs(jax.random.normal(kv, (cout,), jnp.float32)) + 0.5
        scale = gamma / jnp.sqrt(rvar + eps)
        shift = beta - rmean * scale

        # Block-Toeplitz weight per kh tap:
        #   T[kh, (w+kw)*cin + ci, w*cout + co] = W_hwio[kh, kw, ci, co]
        # so the kernel's LHS is simply the padded row slab in its natural
        # (W+2)*cin lane order (no in-kernel im2col).
        w_hwio = np.asarray(jnp.transpose(w, (2, 3, 1, 0)))   # (3, 3, cin, cout)
        T = np.zeros((3, (W + 2) * cin, W * cout), np.float32)
        for kh in range(3):
            for kw in range(3):
                for col in range(W):
                    T[kh,
                      (col + kw) * cin:(col + kw + 1) * cin,
                      col * cout:(col + 1) * cout] = w_hwio[kh, kw]
        t_mat = jnp.asarray(T, jnp.bfloat16)                   # bf16 operands for the MXU

        # BN scale/shift tiled to the lane-dense (w*cout + co) output layout.
        scale_row = jnp.tile(scale, W).reshape(1, W * cout).astype(jnp.float32)
        shift_row = jnp.tile(shift, W).reshape(1, W * cout).astype(jnp.float32)
        return dict(w_raw=w, scale=scale, shift=shift,
                    t_mat=t_mat, scale_row=scale_row, shift_row=shift_row)

    p1 = one_stage(ks[0], ks[1], ks[2], ks[3], ks[4], in_channel, out_channel)
    p2 = one_stage(ks[5], ks[6], ks[7], ks[8], ks[9], out_channel, out_channel)
    return p1, p2


# ---------------------------------------------------------------------------
# Pure-JAX reference (f32) for validation
# ---------------------------------------------------------------------------
def reference_forward_nchw(x_nchw, p1, p2):
    def stage_fn(x, p):
        xp = jnp.pad(x, ((0, 0), (0, 0), (1, 1), (1, 1)), mode="reflect")
        y = jax.lax.conv_general_dilated(
            xp, p["w_raw"], window_strides=(1, 1), padding="VALID",
            dimension_numbers=("NCHW", "OIHW", "NCHW"))
        scale = p["scale"].reshape(1, -1, 1, 1)
        shift = p["shift"].reshape(1, -1, 1, 1)
        return jnp.maximum(y * scale + shift, 0.0)

    return stage_fn(stage_fn(x_nchw, p1), p2)


if __name__ == "__main__":
    key = jax.random.PRNGKey(0)
    k_x, k_p = jax.random.split(key)

    N, Cin, H, W = 2, 4, 16, 16
    Cout = 8

    x = jax.random.normal(k_x, (N, Cin, H, W), jnp.float32)   # NCHW, like PyTorch
    p1, p2 = make_conv_block_params(k_p, Cin, Cout, W)

    out = conv_block_forward_nchw(
        x,
        p1["t_mat"], p1["scale_row"], p1["shift_row"],
        p2["t_mat"], p2["scale_row"], p2["shift_row"],
    )
    out = jax.block_until_ready(out)

    assert out.shape == (N, Cout, H, W), out.shape
    assert bool(jnp.all(jnp.isfinite(out)))
    assert bool(jnp.all(out >= 0.0))   # ReLU output

    # Validate against the f32 reference (kernel uses bf16 matmul operands -> loose tol).
    ref = jax.block_until_ready(reference_forward_nchw(x, p1, p2))
    assert bool(jnp.allclose(out, ref, atol=5e-2, rtol=5e-2)), (
        float(jnp.max(jnp.abs(out - ref))))

    print("KERNEL_OK")
</pallas_src>

<mosaic_0001>
module attributes {stable_mosaic.version = 11 : i64} {
  func.func @kernel(%arg0: memref<2x16x64xf32, #tpu.memory_space<vmem>>, %arg1: memref<3x72x128xbf16, #tpu.memory_space<vmem>>, %arg2: memref<1x128xf32, #tpu.memory_space<vmem>>, %arg3: memref<1x128xf32, #tpu.memory_space<vmem>>, %arg4: memref<3x144x128xbf16, #tpu.memory_space<vmem>>, %arg5: memref<1x128xf32, #tpu.memory_space<vmem>>, %arg6: memref<1x128xf32, #tpu.memory_space<vmem>>, %arg7: memref<2x16x128xf32, #tpu.memory_space<vmem>>) attributes {dimension_semantics = [], scalar_prefetch = 0 : i64, scratch_operands = 0 : i64, tpu.core_type = #tpu.core_type<tc>} {
    %c0 = arith.constant 0 : index
    %c0_0 = arith.constant 0 : index
    %c0_1 = arith.constant 0 : index
    %0 = vector.load %arg0[%c0, %c0_0, %c0_1] : memref<2x16x64xf32, #tpu.memory_space<vmem>>, vector<2x16x64xf32>
    %1 = arith.truncf %0 : vector<2x16x64xf32> to vector<2x16x64xbf16>
    %2 = vector.extract_strided_slice %1 {offsets = [0, 0, 4], sizes = [2, 16, 4], strides = [1, 1, 1]} : vector<2x16x64xbf16> to vector<2x16x4xbf16>
    %3 = vector.extract_strided_slice %1 {offsets = [0, 0, 56], sizes = [2, 16, 4], strides = [1, 1, 1]} : vector<2x16x64xbf16> to vector<2x16x4xbf16>
    %4 = tpu.concatenate %2, %1, %3 in 2 : vector<2x16x4xbf16>, vector<2x16x64xbf16>, vector<2x16x4xbf16> -> vector<2x16x72xbf16>
    %5 = vector.extract_strided_slice %4 {offsets = [0, 1, 0], sizes = [2, 1, 72], strides = [1, 1, 1]} : vector<2x16x72xbf16> to vector<2x1x72xbf16>
    %6 = vector.extract_strided_slice %4 {offsets = [0, 14, 0], sizes = [2, 1, 72], strides = [1, 1, 1]} : vector<2x16x72xbf16> to vector<2x1x72xbf16>
    %7 = tpu.concatenate %5, %4, %6 in 1 : vector<2x1x72xbf16>, vector<2x16x72xbf16>, vector<2x1x72xbf16> -> vector<2x18x72xbf16>
    %8 = vector.extract_strided_slice %7 {offsets = [0, 0, 0], sizes = [2, 16, 72], strides = [1, 1, 1]} : vector<2x18x72xbf16> to vector<2x16x72xbf16>
    %9 = vector.shape_cast %8 : vector<2x16x72xbf16> to vector<32x72xbf16>
    %c0_2 = arith.constant 0 : index
    %c0_3 = arith.constant 0 : index
    %c0_4 = arith.constant 0 : index
    %10 = vector.load %arg1[%c0_2, %c0_3, %c0_4] : memref<3x72x128xbf16, #tpu.memory_space<vmem>>, vector<1x72x128xbf16>
    %11 = vector.shape_cast %10 : vector<1x72x128xbf16> to vector<72x128xbf16>
    %cst = arith.constant dense<0.000000e+00> : vector<32x128xf32>
    %12 = tpu.matmul %9, %11, %cst {dimension_numbers = #tpu.dot_dimension_numbers<[1], [0], [0], [1], [0, 0, 1, 1], [], []>} : vector<32x72xbf16>, vector<72x128xbf16>, vector<32x128xf32> -> vector<32x128xf32>
    %13 = vector.extract_strided_slice %7 {offsets = [0, 1, 0], sizes = [2, 16, 72], strides = [1, 1, 1]} : vector<2x18x72xbf16> to vector<2x16x72xbf16>
    %14 = vector.shape_cast %13 : vector<2x16x72xbf16> to vector<32x72xbf16>
    %c1 = arith.constant 1 : index
    %c0_5 = arith.constant 0 : index
    %c0_6 = arith.constant 0 : index
    %15 = vector.load %arg1[%c1, %c0_5, %c0_6] : memref<3x72x128xbf16, #tpu.memory_space<vmem>>, vector<1x72x128xbf16>
    %16 = vector.shape_cast %15 : vector<1x72x128xbf16> to vector<72x128xbf16>
    %cst_7 = arith.constant dense<0.000000e+00> : vector<32x128xf32>
    %17 = tpu.matmul %14, %16, %cst_7 {dimension_numbers = #tpu.dot_dimension_numbers<[1], [0], [0], [1], [0, 0, 1, 1], [], []>} : vector<32x72xbf16>, vector<72x128xbf16>, vector<32x128xf32> -> vector<32x128xf32>
    %18 = arith.addf %12, %17 : vector<32x128xf32>
    %19 = vector.extract_strided_slice %7 {offsets = [0, 2, 0], sizes = [2, 16, 72], strides = [1, 1, 1]} : vector<2x18x72xbf16> to vector<2x16x72xbf16>
    %20 = vector.shape_cast %19 : vector<2x16x72xbf16> to vector<32x72xbf16>
    %c2 = arith.constant 2 : index
    %c0_8 = arith.constant 0 : index
    %c0_9 = arith.constant 0 : index
    %21 = vector.load %arg1[%c2, %c0_8, %c0_9] : memref<3x72x128xbf16, #tpu.memory_space<vmem>>, vector<1x72x128xbf16>
    %22 = vector.shape_cast %21 : vector<1x72x128xbf16> to vector<72x128xbf16>
    %cst_10 = arith.constant dense<0.000000e+00> : vector<32x128xf32>
    %23 = tpu.matmul %20, %22, %cst_10 {dimension_numbers = #tpu.dot_dimension_numbers<[1], [0], [0], [1], [0, 0, 1, 1], [], []>} : vector<32x72xbf16>, vector<72x128xbf16>, vector<32x128xf32> -> vector<32x128xf32>
    %24 = arith.addf %18, %23 : vector<32x128xf32>
    %c0_11 = arith.constant 0 : index
    %c0_12 = arith.constant 0 : index
    %25 = vector.load %arg2[%c0_11, %c0_12] : memref<1x128xf32, #tpu.memory_space<vmem>>, vector<1x128xf32>
    %26 = vector.broadcast %25 : vector<1x128xf32> to vector<32x128xf32>
    %27 = arith.mulf %24, %26 : vector<32x128xf32>
    %c0_13 = arith.constant 0 : index
    %c0_14 = arith.constant 0 : index
    %28 = vector.load %arg3[%c0_13, %c0_14] : memref<1x128xf32, #tpu.memory_space<vmem>>, vector<1x128xf32>
    %29 = vector.broadcast %28 : vector<1x128xf32> to vector<32x128xf32>
    %30 = arith.addf %27, %29 : vector<32x128xf32>
    %cst_15 = arith.constant 0.000000e+00 : f32
    %31 = vector.broadcast %cst_15 : f32 to vector<32x128xf32>
    %32 = arith.maximumf %30, %31 : vector<32x128xf32>
    %33 = arith.truncf %32 : vector<32x128xf32> to vector<32x128xbf16>
    %34 = vector.shape_cast %33 : vector<32x128xbf16> to vector<2x16x128xbf16>
    %35 = vector.extract_strided_slice %34 {offsets = [0, 0, 8], sizes = [2, 16, 8], strides = [1, 1, 1]} : vector<2x16x128xbf16> to vector<2x16x8xbf16>
    %36 = vector.extract_strided_slice %34 {offsets = [0, 0, 112], sizes = [2, 16, 8], strides = [1, 1, 1]} : vector<2x16x128xbf16> to vector<2x16x8xbf16>
    %37 = tpu.concatenate %35, %34, %36 in 2 : vector<2x16x8xbf16>, vector<2x16x128xbf16>, vector<2x16x8xbf16> -> vector<2x16x144xbf16>
    %38 = vector.extract_strided_slice %37 {offsets = [0, 1, 0], sizes = [2, 1, 144], strides = [1, 1, 1]} : vector<2x16x144xbf16> to vector<2x1x144xbf16>
    %39 = vector.extract_strided_slice %37 {offsets = [0, 14, 0], sizes = [2, 1, 144], strides = [1, 1, 1]} : vector<2x16x144xbf16> to vector<2x1x144xbf16>
    %40 = tpu.concatenate %38, %37, %39 in 1 : vector<2x1x144xbf16>, vector<2x16x144xbf16>, vector<2x1x144xbf16> -> vector<2x18x144xbf16>
    %41 = vector.extract_strided_slice %40 {offsets = [0, 0, 0], sizes = [2, 16, 144], strides = [1, 1, 1]} : vector<2x18x144xbf16> to vector<2x16x144xbf16>
    %42 = vector.shape_cast %41 : vector<2x16x144xbf16> to vector<32x144xbf16>
    %c0_16 = arith.constant 0 : index
    %c0_17 = arith.constant 0 : index
    %c0_18 = arith.constant 0 : index
    %43 = vector.load %arg4[%c0_16, %c0_17, %c0_18] : memref<3x144x128xbf16, #tpu.memory_space<vmem>>, vector<1x144x128xbf16>
    %44 = vector.shape_cast %43 : vector<1x144x128xbf16> to vector<144x128xbf16>
    %cst_19 = arith.constant dense<0.000000e+00> : vector<32x128xf32>
    %45 = tpu.matmul %42, %44, %cst_19 {dimension_numbers = #tpu.dot_dimension_numbers<[1], [0], [0], [1], [0, 0, 1, 1], [], []>} : vector<32x144xbf16>, vector<144x128xbf16>, vector<32x128xf32> -> vector<32x128xf32>
    %46 = vector.extract_strided_slice %40 {offsets = [0, 1, 0], sizes = [2, 16, 144], strides = [1, 1, 1]} : vector<2x18x144xbf16> to vector<2x16x144xbf16>
    %47 = vector.shape_cast %46 : vector<2x16x144xbf16> to vector<32x144xbf16>
    %c1_20 = arith.constant 1 : index
    %c0_21 = arith.constant 0 : index
    %c0_22 = arith.constant 0 : index
    %48 = vector.load %arg4[%c1_20, %c0_21, %c0_22] : memref<3x144x128xbf16, #tpu.memory_space<vmem>>, vector<1x144x128xbf16>
    %49 = vector.shape_cast %48 : vector<1x144x128xbf16> to vector<144x128xbf16>
    %cst_23 = arith.constant dense<0.000000e+00> : vector<32x128xf32>
    %50 = tpu.matmul %47, %49, %cst_23 {dimension_numbers = #tpu.dot_dimension_numbers<[1], [0], [0], [1], [0, 0, 1, 1], [], []>} : vector<32x144xbf16>, vector<144x128xbf16>, vector<32x128xf32> -> vector<32x128xf32>
    %51 = arith.addf %45, %50 : vector<32x128xf32>
    %52 = vector.extract_strided_slice %40 {offsets = [0, 2, 0], sizes = [2, 16, 144], strides = [1, 1, 1]} : vector<2x18x144xbf16> to vector<2x16x144xbf16>
    %53 = vector.shape_cast %52 : vector<2x16x144xbf16> to vector<32x144xbf16>
    %c2_24 = arith.constant 2 : index
    %c0_25 = arith.constant 0 : index
    %c0_26 = arith.constant 0 : index
    %54 = vector.load %arg4[%c2_24, %c0_25, %c0_26] : memref<3x144x128xbf16, #tpu.memory_space<vmem>>, vector<1x144x128xbf16>
    %55 = vector.shape_cast %54 : vector<1x144x128xbf16> to vector<144x128xbf16>
    %cst_27 = arith.constant dense<0.000000e+00> : vector<32x128xf32>
    %56 = tpu.matmul %53, %55, %cst_27 {dimension_numbers = #tpu.dot_dimension_numbers<[1], [0], [0], [1], [0, 0, 1, 1], [], []>} : vector<32x144xbf16>, vector<144x128xbf16>, vector<32x128xf32> -> vector<32x128xf32>
    %57 = arith.addf %51, %56 : vector<32x128xf32>
    %c0_28 = arith.constant 0 : index
    %c0_29 = arith.constant 0 : index
    %58 = vector.load %arg5[%c0_28, %c0_29] : memref<1x128xf32, #tpu.memory_space<vmem>>, vector<1x128xf32>
    %59 = vector.broadcast %58 : vector<1x128xf32> to vector<32x128xf32>
    %60 = arith.mulf %57, %59 : vector<32x128xf32>
    %c0_30 = arith.constant 0 : index
    %c0_31 = arith.constant 0 : index
    %61 = vector.load %arg6[%c0_30, %c0_31] : memref<1x128xf32, #tpu.memory_space<vmem>>, vector<1x128xf32>
    %62 = vector.broadcast %61 : vector<1x128xf32> to vector<32x128xf32>
    %63 = arith.addf %60, %62 : vector<32x128xf32>
    %cst_32 = arith.constant 0.000000e+00 : f32
    %64 = vector.broadcast %cst_32 : f32 to vector<32x128xf32>
    %65 = arith.maximumf %63, %64 : vector<32x128xf32>
    %66 = vector.shape_cast %65 : vector<32x128xf32> to vector<2x16x128xf32>
    %c0_33 = arith.constant 0 : index
    %c0_34 = arith.constant 0 : index
    %c0_35 = arith.constant 0 : index
    %67 = vector.load %arg7[%c0_33, %c0_34, %c0_35] : memref<2x16x128xf32, #tpu.memory_space<vmem>>, vector<2x16x128xf32>
    tpu.vector_store %arg7[%c0_33, %c0_34, %c0_35], %66 {strides = array<i32>} : memref<2x16x128xf32, #tpu.memory_space<vmem>>, vector<2x16x128xf32>,
    return
  }
}

</mosaic_0001>

<llo_original>
// kernel: conv_block_forward_nchw.1
$region0: #{conv_block_forward_nchw.1}
  #allocation0 [shape = 'u32[]', space=smem, size = 0x4, offset = 0x4, fixed_abs, tag = 'smem constant byte address 0x4 - core index']
  #allocation1 [shape = 'u32[72,128]{1,0:T(1,128)}', space=vmem, size = 0x9000, scoped, tag = 'internal scratch']
  %s0 = inlined_call_operand.vmem [shape: f32[2,16,64], index: 0, kind: input, shape index: {}]
  %s1 = inlined_call_operand.vmem [shape: bf16[3,72,128], index: 1, kind: input, shape index: {}]
  %s2 = inlined_call_operand.vmem [shape: f32[1,128], index: 2, kind: input, shape index: {}]
  %s3 = inlined_call_operand.vmem [shape: f32[1,128], index: 3, kind: input, shape index: {}]
  %s4 = inlined_call_operand.vmem [shape: bf16[3,144,128], index: 4, kind: input, shape index: {}]
  %s5 = inlined_call_operand.vmem [shape: f32[1,128], index: 5, kind: input, shape index: {}]
  %s6 = inlined_call_operand.vmem [shape: f32[1,128], index: 6, kind: input, shape index: {}]
  %s7 = inlined_call_operand.vmem [shape: f32[2,16,128], index: 7, kind: output, shape index: {}]
  %s8 = sld [smem:[#allocation0]]
  $region38: #{conv_block_forward_nchw.1} parent=0
    _
  %s10 = ssub.s32 1, %s8
  %s11 = scalar_select 0, %s10, %s8
  // Predicated region
  $region2: #{conv_block_forward_nchw.1} parent=0 // pred_check
    _
  $region3: #{conv_block_forward_nchw.1} parent=0 // pred_check_branch
    %13 = sbr.rel (0) target = $region5
  $region4: #{conv_block_forward_nchw.1} parent=0 // pred_region
    _
  $region5: #{conv_block_forward_nchw.1} parent=0 // pred_fallthru
    _
  // Predicated region
  $region6: #{conv_block_forward_nchw.1} parent=0 // pred_check
    _
  $region7: #{conv_block_forward_nchw.1} parent=0 // pred_check_branch
    %15 = sbr.rel (0) target = $region9
  $region8: #{conv_block_forward_nchw.1} parent=0 // pred_region
    _
  $region9: #{conv_block_forward_nchw.1} parent=0 // pred_fallthru
    _
  // Predicated region
  $region10: #{conv_block_forward_nchw.1} parent=0 // pred_check
    _
  $region11: #{conv_block_forward_nchw.1} parent=0 // pred_check_branch
    %17 = sbr.rel (0) target = $region13
  $region12: #{conv_block_forward_nchw.1} parent=0 // pred_region
    _
  $region13: #{conv_block_forward_nchw.1} parent=0 // pred_fallthru
    _
  // Predicated region
  $region14: #{conv_block_forward_nchw.1} parent=0 // pred_check
    _
  $region15: #{conv_block_forward_nchw.1} parent=0 // pred_check_branch
    %19 = sbr.rel (0) target = $region17
  $region16: #{conv_block_forward_nchw.1} parent=0 // pred_region
    _
  $region17: #{conv_block_forward_nchw.1} parent=0 // pred_fallthru
    _
  // Predicated region
  $region18: #{conv_block_forward_nchw.1} parent=0 // pred_check
    _
  $region19: #{conv_block_forward_nchw.1} parent=0 // pred_check_branch
    %21 = sbr.rel (0) target = $region21
  $region20: #{conv_block_forward_nchw.1} parent=0 // pred_region
    _
  $region21: #{conv_block_forward_nchw.1} parent=0 // pred_fallthru
    _
  // Predicated region
  $region22: #{conv_block_forward_nchw.1} parent=0 // pred_check
    _
  $region23: #{conv_block_forward_nchw.1} parent=0 // pred_check_branch
    %23 = sbr.rel (0) target = $region25
  $region24: #{conv_block_forward_nchw.1} parent=0 // pred_region
    _
  $region25: #{conv_block_forward_nchw.1} parent=0 // pred_fallthru
    _
  // Predicated region
  $region26: #{conv_block_forward_nchw.1} parent=0 // pred_check
    _
  $region27: #{conv_block_forward_nchw.1} parent=0 // pred_check_branch
    %25 = sbr.rel (0) target = $region29
  $region28: #{conv_block_forward_nchw.1} parent=0 // pred_region
    _
  $region29: #{conv_block_forward_nchw.1} parent=0 // pred_fallthru
    _
  %v27 = vld [vmem:[%s0] sm:$0xff]
  %v28 = vld [vmem:[%s0 + $0x8] sm:$0xff]
  %v29 = vld [vmem:[%s0 + $0x10] sm:$0xff]
  %v30 = vld [vmem:[%s0 + $0x18] sm:$0xff]
  %v31 = vpack.c.bf16 %v27, %v27
  %v32 = vpack.c.bf16 %v28, %v28
  %v33 = vpack.c.bf16 %v29, %v29
  %v34 = vpack.c.bf16 %v30, %v30
  %v39 = vunpack.c.l.b16 %v31
  %v40 = vunpack.c.l.b16 %v32
  %v41 = vunpack.c.l.b16 %v33
  %v42 = vunpack.c.l.b16 %v34
  %v43 = vpack.c.b16 %v40, %v39
  %v44 = vpack.c.b16 %v42, %v41
  %45 = vrot.lane.b32.xlu0 %v43, 124
  %v46 = vpop.permute.xlu0 %45
  %47 = vrot.lane.b32.xlu0 %v44, 124
  %v48 = vpop.permute.xlu0 %47
  %49 = vrot.lane.b32.xlu0 %v43, 4
  %v50 = vpop.permute.xlu0 %49
  %51 = vrot.lane.b32.xlu0 %v44, 4
  %v52 = vpop.permute.xlu0 %51
  %53 = vrot.lane.b32.xlu0 %v43, 12
  %v54 = vpop.permute.xlu0 %53
  %55 = vrot.lane.b32.xlu0 %v44, 12
  %v56 = vpop.permute.xlu0 %55
  %vm57 = vcmask 31744
  %v60 = vsel %vm57, %v46, %v50
  %v63 = vsel %vm57, %v48, %v52
  %vm64 = vcmask 556032
  %v66 = vsel %vm64, %v60, %v54
  %v68 = vsel %vm64, %v63, %v56
  %v69 = vshrl.u32 %v66, 16
  %v71 = vshrl.u32 %v68, 16
  %v75 = vrot.slane %v69, 7
  %v76 = vshll.u32 %v66, 16
  %v78 = vor.u32 %v75, %v76
  %v79 = vrot.slane %v71, 7
  %v80 = vshll.u32 %v68, 16
  %v82 = vor.u32 %v79, %v80
  %v87 = vrot.slane %v76, 7
  %v88 = vrot.slane %v80, 7
  %vm91 = vcmask 1040384
  %vm92 = vsmask.f32 256
  %vm93 = vmand %vm91, %vm92
  %v94 = vsel %vm93, %v69, %v78
  %v95 = vsel %vm93, %v71, %v82
  %v96 = vsel %vm93, %v75, %v87
  %v97 = vsel %vm93, %v79, %v88
  %v98 = vld [vmem:[%s1] sm:$0xf]
  %v99 = vld [vmem:[%s1 + $0x4] sm:$0xf]
  %v100 = vld [vmem:[%s1 + $0x8] sm:$0xf]
  %v101 = vld [vmem:[%s1 + $0xc] sm:$0xf]
  %v102 = vld [vmem:[%s1 + $0x10] sm:$0xf]
  %v103 = vld [vmem:[%s1 + $0x14] sm:$0xf]
  %v104 = vld [vmem:[%s1 + $0x18] sm:$0xf]
  %v105 = vld [vmem:[%s1 + $0x1c] sm:$0xf]
  %v106 = vld [vmem:[%s1 + $0x20] sm:$0xf]
  %vm107 = vsmask.f32 7424
  %v109 = vshrl.u32 %v94, 16
  %v111 = vshll.u32 %v94, 16
  %v113 = vrot.slane %v111, 1
  %v114 = vor.u32 %v109, %v113
  %v116 = vshll.u32 %v96, 16
  %v118 = vrot.slane %v116, 1
  %v119 = vsel %vm107, %v114, %v118
  %v121 = vshrl.u32 %v95, 16
  %v123 = vshll.u32 %v95, 16
  %v125 = vrot.slane %v123, 1
  %v126 = vor.u32 %v121, %v125
  %v128 = vshll.u32 %v97, 16
  %v130 = vrot.slane %v128, 1
  %v131 = vsel %vm107, %v126, %v130
  %s132 = scalar_lea.vmem %s1, 36
  %v133 = vld [vmem:[%s132] sm:$0xf]
  %v134 = vld [vmem:[%s132 + $0x4] sm:$0xf]
  %v135 = vld [vmem:[%s132 + $0x8] sm:$0xf]
  %v136 = vld [vmem:[%s132 + $0xc] sm:$0xf]
  %v137 = vld [vmem:[%s132 + $0x10] sm:$0xf]
  %v138 = vld [vmem:[%s132 + $0x14] sm:$0xf]
  %v139 = vld [vmem:[%s132 + $0x18] sm:$0xf]
  %v140 = vld [vmem:[%s132 + $0x1c] sm:$0xf]
  %v141 = vld [vmem:[%s132 + $0x20] sm:$0xf]
  %v151 = vunpack.c.l.b16 %v133
  %v152 = vunpack.c.l.b16 %v134
  %v153 = vunpack.c.l.b16 %v135
  %v154 = vunpack.c.l.b16 %v136
  %v155 = vunpack.c.l.b16 %v137
  %v156 = vunpack.c.l.b16 %v138
  %v157 = vunpack.c.l.b16 %v139
  %v158 = vunpack.c.l.b16 %v140
  %v159 = vunpack.c.l.b16 %v141
  %v160 = vpack.c.b16 %v152, %v151
  %v161 = vpack.c.b16 %v154, %v153
  %v162 = vpack.c.b16 %v156, %v155
  %v163 = vpack.c.b16 %v158, %v157
  %v164 = vpack.c.b16 %v159, %v159
  %vm169 = vcmask 588800
  %v171 = vsel %vm169, %v119, 0
  %v174 = vsel %vm169, %v131, 0
  %vm176 = vcmask 1043456
  %v178 = vsel %vm176, %v164, 0
  %180 = vmatpush.bf16.msra.mxu0 0
  %181 = vmatpush.bf16.msra.mxu0 0
  %182 = vmatpush.bf16.msra.mxu0 0
  %183 = vmatpush.bf16.msra.mxu0 %v178
  %184 = vmatpush.bf16.msra.mxu0 %v163
  %185 = vmatpush.bf16.msra.mxu0 %v162
  %186 = vmatpush.bf16.msra.mxu0 %v161
  %187 = vmatpush.bf16.msra.mxu0 %v160
  %188 = vmatmul.bf16.gmra.mxu0 %v171
  %v189 = vpop.f32.mrf.mxu0
  %v190 = vadd.f32 0.0, %v189
  %v191 = vpop.f32.mrf.mxu0
  %v192 = vadd.f32 0.0, %v191
  %193 = vmatmul.bf16.gmra.mxu0 %v174
  %v194 = vpop.f32.mrf.mxu0
  %v195 = vadd.f32 0.0, %v194
  %v196 = vpop.f32.mrf.mxu0
  %v197 = vadd.f32 0.0, %v196
  %198 = vdwg.mxu0
  %v208 = vunpack.c.l.b16 %v98
  %v209 = vunpack.c.l.b16 %v99
  %v210 = vunpack.c.l.b16 %v100
  %v211 = vunpack.c.l.b16 %v101
  %v212 = vunpack.c.l.b16 %v102
  %v213 = vunpack.c.l.b16 %v103
  %v214 = vunpack.c.l.b16 %v104
  %v215 = vunpack.c.l.b16 %v105
  %v216 = vunpack.c.l.b16 %v106
  %v217 = vpack.c.b16 %v209, %v208
  %v218 = vpack.c.b16 %v211, %v210
  %v219 = vpack.c.b16 %v213, %v212
  %v220 = vpack.c.b16 %v215, %v214
  %v221 = vpack.c.b16 %v216, %v216
  %v226 = vsel %vm169, %v94, 0
  %v228 = vsel %vm169, %v95, 0
  %v231 = vsel %vm176, %v221, 0
  %233 = vmatpush.bf16.msra.mxu0 0
  %234 = vmatpush.bf16.msra.mxu0 0
  %235 = vmatpush.bf16.msra.mxu0 0
  %236 = vmatpush.bf16.msra.mxu0 %v231
  %237 = vmatpush.bf16.msra.mxu0 %v220
  %238 = vmatpush.bf16.msra.mxu0 %v219
  %239 = vmatpush.bf16.msra.mxu0 %v218
  %240 = vmatpush.bf16.msra.mxu0 %v217
  %241 = vmatmul.bf16.gmra.mxu0 %v226
  %v242 = vpop.f32.mrf.mxu0
  %v243 = vadd.f32 %v190, %v242
  %v244 = vpop.f32.mrf.mxu0
  %v245 = vadd.f32 %v192, %v244
  %246 = vmatmul.bf16.gmra.mxu0 %v228
  %v247 = vpop.f32.mrf.mxu0
  %v248 = vadd.f32 %v195, %v247
  %v249 = vpop.f32.mrf.mxu0
  %v250 = vadd.f32 %v197, %v249
  %251 = vdwg.mxu0
  %vm256 = vcmask 1046528
  %v257 = vrot.slane %v94, 1
  %v258 = vrot.slane %v96, 1
  %v259 = vsel %vm256, %v257, %v258
  %v260 = vrot.slane %v95, 1
  %v261 = vrot.slane %v97, 1
  %v262 = vsel %vm256, %v260, %v261
  %s263 = scalar_lea.vmem %s1, 72
  %v264 = vld [vmem:[%s263] sm:$0xf]
  %v265 = vld [vmem:[%s263 + $0x4] sm:$0xf]
  %v266 = vld [vmem:[%s263 + $0x8] sm:$0xf]
  %v267 = vld [vmem:[%s263 + $0xc] sm:$0xf]
  %v268 = vld [vmem:[%s263 + $0x10] sm:$0xf]
  %v269 = vld [vmem:[%s263 + $0x14] sm:$0xf]
  %v270 = vld [vmem:[%s263 + $0x18] sm:$0xf]
  %v271 = vld [vmem:[%s263 + $0x1c] sm:$0xf]
  %v272 = vld [vmem:[%s263 + $0x20] sm:$0xf]
  %v282 = vunpack.c.l.b16 %v264
  %v283 = vunpack.c.l.b16 %v265
  %v284 = vunpack.c.l.b16 %v266
  %v285 = vunpack.c.l.b16 %v267
  %v286 = vunpack.c.l.b16 %v268
  %v287 = vunpack.c.l.b16 %v269
  %v288 = vunpack.c.l.b16 %v270
  %v289 = vunpack.c.l.b16 %v271
  %v290 = vunpack.c.l.b16 %v272
  %v291 = vpack.c.b16 %v283, %v282
  %v292 = vpack.c.b16 %v285, %v284
  %v293 = vpack.c.b16 %v287, %v286
  %v294 = vpack.c.b16 %v289, %v288
  %v295 = vpack.c.b16 %v290, %v290
  %v301 = vsel %vm169, %v259, 0
  %v304 = vsel %vm169, %v262, 0
  %v307 = vsel %vm176, %v295, 0
  %309 = vmatpush.bf16.msra.mxu0 0
  %310 = vmatpush.bf16.msra.mxu0 0
  %311 = vmatpush.bf16.msra.mxu0 0
  %312 = vmatpush.bf16.msra.mxu0 %v307
  %313 = vmatpush.bf16.msra.mxu0 %v294
  %314 = vmatpush.bf16.msra.mxu0 %v293
  %315 = vmatpush.bf16.msra.mxu0 %v292
  %316 = vmatpush.bf16.msra.mxu0 %v291
  %317 = vmatmul.bf16.gmra.mxu0 %v301
  %v318 = vpop.f32.mrf.mxu0
  %v319 = vadd.f32 0.0, %v318
  %v320 = vpop.f32.mrf.mxu0
  %v321 = vadd.f32 0.0, %v320
  %322 = vmatmul.bf16.gmra.mxu0 %v304
  %v323 = vpop.f32.mrf.mxu0
  %v324 = vadd.f32 0.0, %v323
  %v325 = vpop.f32.mrf.mxu0
  %v326 = vadd.f32 0.0, %v325
  %327 = vdwg.mxu0
  %v328 = vadd.f32 %v243, %v319
  %v329 = vadd.f32 %v245, %v321
  %v330 = vadd.f32 %v248, %v324
  %v331 = vadd.f32 %v250, %v326
  %v332 = vld [vmem:[%s2] sm:$0x1]
  %v334 = vperm.slane %v332, 0
  %v336 = vmul.f32 %v328, %v334
  %v337 = vmul.f32 %v329, %v334
  %v338 = vmul.f32 %v330, %v334
  %v339 = vmul.f32 %v331, %v334
  %v340 = vld [vmem:[%s3] sm:$0x1]
  %v342 = vperm.slane %v340, 0
  %v344 = vadd.f32 %v336, %v342
  %v345 = vadd.f32 %v337, %v342
  %v346 = vadd.f32 %v338, %v342
  %v347 = vadd.f32 %v339, %v342
  %v348 = vmax.f32 %v344, 0.0
  %v349 = vmax.f32 %v345, 0.0
  %v350 = vmax.f32 %v346, 0.0
  %v351 = vmax.f32 %v347, 0.0
  %v352 = vpack.c.bf16 %v348, %v348
  %v353 = vpack.c.bf16 %v349, %v349
  %v354 = vpack.c.bf16 %v350, %v350
  %v355 = vpack.c.bf16 %v351, %v351
  %v360 = vunpack.c.l.b16 %v352
  %v361 = vunpack.c.l.b16 %v353
  %v362 = vunpack.c.l.b16 %v354
  %v363 = vunpack.c.l.b16 %v355
  %v364 = vpack.c.b16 %v361, %v360
  %v365 = vpack.c.b16 %v363, %v362
  %366 = vrot.lane.b32.xlu0 %v364, 120
  %v367 = vpop.permute.xlu0 %366
  %368 = vrot.lane.b32.xlu0 %v365, 120
  %v369 = vpop.permute.xlu0 %368
  %370 = vrot.lane.b32.xlu0 %v364, 8
  %v371 = vpop.permute.xlu0 %370
  %372 = vrot.lane.b32.xlu0 %v365, 8
  %v373 = vpop.permute.xlu0 %372
  %374 = vrot.lane.b32.xlu0 %v364, 24
  %v375 = vpop.permute.xlu0 %374
  %376 = vrot.lane.b32.xlu0 %v365, 24
  %v377 = vpop.permute.xlu0 %376
  %vm378 = vcmask 64512
  %v381 = vsel %vm378, %v367, %v371
  %v384 = vsel %vm378, %v369, %v373
  %v386 = vsel %vm378, %v371, %v375
  %v388 = vsel %vm378, %v373, %v377
  %v389 = vshrl.u32 %v381, 16
  %v391 = vshrl.u32 %v386, 16
  %v393 = vshrl.u32 %v384, 16
  %v395 = vshrl.u32 %v388, 16
  %v401 = vrot.slane %v389, 7
  %v402 = vshll.u32 %v381, 16
  %v404 = vor.u32 %v401, %v402
  %v405 = vrot.slane %v391, 7
  %v406 = vshll.u32 %v386, 16
  %v408 = vor.u32 %v405, %v406
  %v409 = vrot.slane %v393, 7
  %v410 = vshll.u32 %v384, 16
  %v412 = vor.u32 %v409, %v410
  %v413 = vrot.slane %v395, 7
  %v414 = vshll.u32 %v388, 16
  %v416 = vor.u32 %v413, %v414
  %v425 = vrot.slane %v402, 7
  %v426 = vrot.slane %v406, 7
  %v427 = vrot.slane %v410, 7
  %v428 = vrot.slane %v414, 7
  %v433 = vsel %vm93, %v389, %v404
  %v434 = vsel %vm93, %v391, %v408
  %v435 = vsel %vm93, %v393, %v412
  %v436 = vsel %vm93, %v395, %v416
  %v437 = vsel %vm93, %v401, %v425
  %v438 = vsel %vm93, %v405, %v426
  %v439 = vsel %vm93, %v409, %v427
  %v440 = vsel %vm93, %v413, %v428
  %v441 = vld [vmem:[%s4] sm:$0xf]
  %v442 = vld [vmem:[%s4 + $0x4] sm:$0xf]
  %v443 = vld [vmem:[%s4 + $0x8] sm:$0xf]
  %v444 = vld [vmem:[%s4 + $0xc] sm:$0xf]
  %v445 = vld [vmem:[%s4 + $0x10] sm:$0xf]
  %v446 = vld [vmem:[%s4 + $0x14] sm:$0xf]
  %v447 = vld [vmem:[%s4 + $0x18] sm:$0xf]
  %v448 = vld [vmem:[%s4 + $0x1c] sm:$0xf]
  %v449 = vld [vmem:[%s4 + $0x20] sm:$0xf]
  %v450 = vld [vmem:[%s4 + $0x24] sm:$0xf]
  %v451 = vld [vmem:[%s4 + $0x28] sm:$0xf]
  %v452 = vld [vmem:[%s4 + $0x2c] sm:$0xf]
  %v453 = vld [vmem:[%s4 + $0x30] sm:$0xf]
  %v454 = vld [vmem:[%s4 + $0x34] sm:$0xf]
  %v455 = vld [vmem:[%s4 + $0x38] sm:$0xf]
  %v456 = vld [vmem:[%s4 + $0x3c] sm:$0xf]
  %v457 = vld [vmem:[%s4 + $0x40] sm:$0xf]
  %v458 = vld [vmem:[%s4 + $0x44] sm:$0xf]
  %v460 = vshrl.u32 %v433, 16
  %v462 = vshll.u32 %v433, 16
  %v464 = vrot.slane %v462, 1
  %v465 = vor.u32 %v460, %v464
  %v467 = vshll.u32 %v437, 16
  %v469 = vrot.slane %v467, 1
  %v470 = vsel %vm107, %v465, %v469
  %v472 = vshrl.u32 %v434, 16
  %v474 = vshll.u32 %v434, 16
  %v476 = vrot.slane %v474, 1
  %v477 = vor.u32 %v472, %v476
  %v479 = vshll.u32 %v438, 16
  %v481 = vrot.slane %v479, 1
  %v482 = vsel %vm107, %v477, %v481
  %v484 = vshrl.u32 %v435, 16
  %v486 = vshll.u32 %v435, 16
  %v488 = vrot.slane %v486, 1
  %v489 = vor.u32 %v484, %v488
  %v491 = vshll.u32 %v439, 16
  %v493 = vrot.slane %v491, 1
  %v494 = vsel %vm107, %v489, %v493
  %v496 = vshrl.u32 %v436, 16
  %v498 = vshll.u32 %v436, 16
  %v500 = vrot.slane %v498, 1
  %v501 = vor.u32 %v496, %v500
  %v503 = vshll.u32 %v440, 16
  %v505 = vrot.slane %v503, 1
  %v506 = vsel %vm107, %v501, %v505
  %s509 = scalar_lea.vmem %s4, 72
  %v510 = vld [vmem:[%s509] sm:$0xf]
  %v511 = vld [vmem:[%s509 + $0x4] sm:$0xf]
  %v512 = vld [vmem:[%s509 + $0x8] sm:$0xf]
  %v513 = vld [vmem:[%s509 + $0xc] sm:$0xf]
  %v514 = vld [vmem:[%s509 + $0x10] sm:$0xf]
  %v515 = vld [vmem:[%s509 + $0x14] sm:$0xf]
  %v516 = vld [vmem:[%s509 + $0x18] sm:$0xf]
  %v517 = vld [vmem:[%s509 + $0x1c] sm:$0xf]
  %v518 = vld [vmem:[%s509 + $0x20] sm:$0xf]
  %v519 = vld [vmem:[%s509 + $0x24] sm:$0xf]
  %v520 = vld [vmem:[%s509 + $0x28] sm:$0xf]
  %v521 = vld [vmem:[%s509 + $0x2c] sm:$0xf]
  %v522 = vld [vmem:[%s509 + $0x30] sm:$0xf]
  %v523 = vld [vmem:[%s509 + $0x34] sm:$0xf]
  %v524 = vld [vmem:[%s509 + $0x38] sm:$0xf]
  %v525 = vld [vmem:[%s509 + $0x3c] sm:$0xf]
  %v526 = vld [vmem:[%s509 + $0x40] sm:$0xf]
  %v527 = vld [vmem:[%s509 + $0x44] sm:$0xf]
  %v546 = vunpack.c.l.b16 %v510
  %v547 = vunpack.c.l.b16 %v511
  %v548 = vunpack.c.l.b16 %v512
  %v549 = vunpack.c.l.b16 %v513
  %v550 = vunpack.c.l.b16 %v514
  %v551 = vunpack.c.l.b16 %v515
  %v552 = vunpack.c.l.b16 %v516
  %v553 = vunpack.c.l.b16 %v517
  %v554 = vunpack.c.l.b16 %v518
  %v555 = vunpack.c.l.b16 %v519
  %v556 = vunpack.c.l.b16 %v520
  %v557 = vunpack.c.l.b16 %v521
  %v558 = vunpack.c.l.b16 %v522
  %v559 = vunpack.c.l.b16 %v523
  %v560 = vunpack.c.l.b16 %v524
  %v561 = vunpack.c.l.b16 %v525
  %v562 = vunpack.c.l.b16 %v526
  %v563 = vunpack.c.l.b16 %v527
  %v564 = vpack.c.b16 %v547, %v546
  %v565 = vpack.c.b16 %v549, %v548
  %v566 = vpack.c.b16 %v551, %v550
  %v567 = vpack.c.b16 %v553, %v552
  %v568 = vpack.c.b16 %v555, %v554
  %v569 = vpack.c.b16 %v557, %v556
  %v570 = vpack.c.b16 %v559, %v558
  %v571 = vpack.c.b16 %v561, %v560
  %v572 = vpack.c.b16 %v563, %v562
  %vm582 = vcmask 130048
  %v584 = vsel %vm582, %v482, 0
  %v587 = vsel %vm582, %v506, 0
  %589 = vmatpush.bf16.msra.mxu0 %v571
  %590 = vmatpush.bf16.msra.mxu0 %v570
  %591 = vmatpush.bf16.msra.mxu0 %v569
  %592 = vmatpush.bf16.msra.mxu0 %v568
  %593 = vmatpush.bf16.msra.mxu0 %v567
  %594 = vmatpush.bf16.msra.mxu0 %v566
  %595 = vmatpush.bf16.msra.mxu0 %v565
  %596 = vmatpush.bf16.msra.mxu0 %v564
  %597 = vmatmul.bf16.gmra.mxu0 %v470
  %v598 = vpop.f32.mrf.mxu0
  %v599 = vadd.f32 0.0, %v598
  %v600 = vpop.f32.mrf.mxu0
  %v601 = vadd.f32 0.0, %v600
  %602 = vmatmul.bf16.gmra.mxu0 %v494
  %v603 = vpop.f32.mrf.mxu0
  %v604 = vadd.f32 0.0, %v603
  %v605 = vpop.f32.mrf.mxu0
  %v606 = vadd.f32 0.0, %v605
  %607 = vdwg.mxu0
  %608 = vmatpush.bf16.msra.mxu0 0
  %609 = vmatpush.bf16.msra.mxu0 0
  %610 = vmatpush.bf16.msra.mxu0 0
  %611 = vmatpush.bf16.msra.mxu0 0
  %612 = vmatpush.bf16.msra.mxu0 0
  %613 = vmatpush.bf16.msra.mxu0 0
  %614 = vmatpush.bf16.msra.mxu0 0
  %615 = vmatpush.bf16.msra.mxu0 %v572
  %616 = vmatmul.bf16.gmra.mxu0 %v584
  %v617 = vpop.f32.mrf.mxu0
  %v618 = vadd.f32 %v599, %v617
  %v619 = vpop.f32.mrf.mxu0
  %v620 = vadd.f32 %v601, %v619
  %621 = vmatmul.bf16.gmra.mxu0 %v587
  %v622 = vpop.f32.mrf.mxu0
  %v623 = vadd.f32 %v604, %v622
  %v624 = vpop.f32.mrf.mxu0
  %v625 = vadd.f32 %v606, %v624
  %626 = vdwg.mxu0
  %v645 = vunpack.c.l.b16 %v441
  %v646 = vunpack.c.l.b16 %v442
  %v647 = vunpack.c.l.b16 %v443
  %v648 = vunpack.c.l.b16 %v444
  %v649 = vunpack.c.l.b16 %v445
  %v650 = vunpack.c.l.b16 %v446
  %v651 = vunpack.c.l.b16 %v447
  %v652 = vunpack.c.l.b16 %v448
  %v653 = vunpack.c.l.b16 %v449
  %v654 = vunpack.c.l.b16 %v450
  %v655 = vunpack.c.l.b16 %v451
  %v656 = vunpack.c.l.b16 %v452
  %v657 = vunpack.c.l.b16 %v453
  %v658 = vunpack.c.l.b16 %v454
  %v659 = vunpack.c.l.b16 %v455
  %v660 = vunpack.c.l.b16 %v456
  %v661 = vunpack.c.l.b16 %v457
  %v662 = vunpack.c.l.b16 %v458
  %v663 = vpack.c.b16 %v646, %v645
  %v664 = vpack.c.b16 %v648, %v647
  %v665 = vpack.c.b16 %v650, %v649
  %v666 = vpack.c.b16 %v652, %v651
  %v667 = vpack.c.b16 %v654, %v653
  %v668 = vpack.c.b16 %v656, %v655
  %v669 = vpack.c.b16 %v658, %v657
  %v670 = vpack.c.b16 %v660, %v659
  %v671 = vpack.c.b16 %v662, %v661
  %v681 = vsel %vm582, %v434, 0
  %v683 = vsel %vm582, %v436, 0
  %685 = vmatpush.bf16.msra.mxu0 %v670
  %686 = vmatpush.bf16.msra.mxu0 %v669
  %687 = vmatpush.bf16.msra.mxu0 %v668
  %688 = vmatpush.bf16.msra.mxu0 %v667
  %689 = vmatpush.bf16.msra.mxu0 %v666
  %690 = vmatpush.bf16.msra.mxu0 %v665
  %691 = vmatpush.bf16.msra.mxu0 %v664
  %692 = vmatpush.bf16.msra.mxu0 %v663
  %693 = vmatmul.bf16.gmra.mxu0 %v433
  %v694 = vpop.f32.mrf.mxu0
  %v695 = vadd.f32 %v618, %v694
  %v696 = vpop.f32.mrf.mxu0
  %v697 = vadd.f32 %v620, %v696
  %698 = vmatmul.bf16.gmra.mxu0 %v435
  %v699 = vpop.f32.mrf.mxu0
  %v700 = vadd.f32 %v623, %v699
  %v701 = vpop.f32.mrf.mxu0
  %v702 = vadd.f32 %v625, %v701
  %703 = vdwg.mxu0
  %704 = vmatpush.bf16.msra.mxu0 0
  %705 = vmatpush.bf16.msra.mxu0 0
  %706 = vmatpush.bf16.msra.mxu0 0
  %707 = vmatpush.bf16.msra.mxu0 0
  %708 = vmatpush.bf16.msra.mxu0 0
  %709 = vmatpush.bf16.msra.mxu0 0
  %710 = vmatpush.bf16.msra.mxu0 0
  %711 = vmatpush.bf16.msra.mxu0 %v671
  %712 = vmatmul.bf16.gmra.mxu0 %v681
  %v713 = vpop.f32.mrf.mxu0
  %v714 = vadd.f32 %v695, %v713
  %v715 = vpop.f32.mrf.mxu0
  %v716 = vadd.f32 %v697, %v715
  %717 = vmatmul.bf16.gmra.mxu0 %v683
  %v718 = vpop.f32.mrf.mxu0
  %v719 = vadd.f32 %v700, %v718
  %v720 = vpop.f32.mrf.mxu0
  %v721 = vadd.f32 %v702, %v720
  %722 = vdwg.mxu0
  %v731 = vrot.slane %v433, 1
  %v732 = vrot.slane %v437, 1
  %v733 = vsel %vm256, %v731, %v732
  %v734 = vrot.slane %v434, 1
  %v735 = vrot.slane %v438, 1
  %v736 = vsel %vm256, %v734, %v735
  %v737 = vrot.slane %v435, 1
  %v738 = vrot.slane %v439, 1
  %v739 = vsel %vm256, %v737, %v738
  %v740 = vrot.slane %v436, 1
  %v741 = vrot.slane %v440, 1
  %v742 = vsel %vm256, %v740, %v741
  %s745 = scalar_lea.vmem %s4, 144
  %v746 = vld [vmem:[%s745] sm:$0xf]
  %v747 = vld [vmem:[%s745 + $0x4] sm:$0xf]
  %v748 = vld [vmem:[%s745 + $0x8] sm:$0xf]
  %v749 = vld [vmem:[%s745 + $0xc] sm:$0xf]
  %v750 = vld [vmem:[%s745 + $0x10] sm:$0xf]
  %v751 = vld [vmem:[%s745 + $0x14] sm:$0xf]
  %v752 = vld [vmem:[%s745 + $0x18] sm:$0xf]
  %v753 = vld [vmem:[%s745 + $0x1c] sm:$0xf]
  %v754 = vld [vmem:[%s745 + $0x20] sm:$0xf]
  %v755 = vld [vmem:[%s745 + $0x24] sm:$0xf]
  %v756 = vld [vmem:[%s745 + $0x28] sm:$0xf]
  %v757 = vld [vmem:[%s745 + $0x2c] sm:$0xf]
  %v758 = vld [vmem:[%s745 + $0x30] sm:$0xf]
  %v759 = vld [vmem:[%s745 + $0x34] sm:$0xf]
  %v760 = vld [vmem:[%s745 + $0x38] sm:$0xf]
  %v761 = vld [vmem:[%s745 + $0x3c] sm:$0xf]
  %v762 = vld [vmem:[%s745 + $0x40] sm:$0xf]
  %v763 = vld [vmem:[%s745 + $0x44] sm:$0xf]
  %v782 = vunpack.c.l.b16 %v746
  %v783 = vunpack.c.l.b16 %v747
  %v784 = vunpack.c.l.b16 %v748
  %v785 = vunpack.c.l.b16 %v749
  %v786 = vunpack.c.l.b16 %v750
  %v787 = vunpack.c.l.b16 %v751
  %v788 = vunpack.c.l.b16 %v752
  %v789 = vunpack.c.l.b16 %v753
  %v790 = vunpack.c.l.b16 %v754
  %v791 = vunpack.c.l.b16 %v755
  %v792 = vunpack.c.l.b16 %v756
  %v793 = vunpack.c.l.b16 %v757
  %v794 = vunpack.c.l.b16 %v758
  %v795 = vunpack.c.l.b16 %v759
  %v796 = vunpack.c.l.b16 %v760
  %v797 = vunpack.c.l.b16 %v761
  %v798 = vunpack.c.l.b16 %v762
  %v799 = vunpack.c.l.b16 %v763
  %v800 = vpack.c.b16 %v783, %v782
  %v801 = vpack.c.b16 %v785, %v784
  %v802 = vpack.c.b16 %v787, %v786
  %v803 = vpack.c.b16 %v789, %v788
  %v804 = vpack.c.b16 %v791, %v790
  %v805 = vpack.c.b16 %v793, %v792
  %v806 = vpack.c.b16 %v795, %v794
  %v807 = vpack.c.b16 %v797, %v796
  %v808 = vpack.c.b16 %v799, %v798
  %v819 = vsel %vm582, %v736, 0
  %v822 = vsel %vm582, %v742, 0
  %824 = vmatpush.bf16.msra.mxu0 %v807
  %825 = vmatpush.bf16.msra.mxu0 %v806
  %826 = vmatpush.bf16.msra.mxu0 %v805
  %827 = vmatpush.bf16.msra.mxu0 %v804
  %828 = vmatpush.bf16.msra.mxu0 %v803
  %829 = vmatpush.bf16.msra.mxu0 %v802
  %830 = vmatpush.bf16.msra.mxu0 %v801
  %831 = vmatpush.bf16.msra.mxu0 %v800
  %832 = vmatmul.bf16.gmra.mxu0 %v733
  %v833 = vpop.f32.mrf.mxu0
  %v834 = vadd.f32 0.0, %v833
  %v835 = vpop.f32.mrf.mxu0
  %v836 = vadd.f32 0.0, %v835
  %837 = vmatmul.bf16.gmra.mxu0 %v739
  %v838 = vpop.f32.mrf.mxu0
  %v839 = vadd.f32 0.0, %v838
  %v840 = vpop.f32.mrf.mxu0
  %v841 = vadd.f32 0.0, %v840
  %842 = vdwg.mxu0
  %843 = vmatpush.bf16.msra.mxu0 0
  %844 = vmatpush.bf16.msra.mxu0 0
  %845 = vmatpush.bf16.msra.mxu0 0
  %846 = vmatpush.bf16.msra.mxu0 0
  %847 = vmatpush.bf16.msra.mxu0 0
  %848 = vmatpush.bf16.msra.mxu0 0
  %849 = vmatpush.bf16.msra.mxu0 0
  %850 = vmatpush.bf16.msra.mxu0 %v808
  %851 = vmatmul.bf16.gmra.mxu0 %v819
  %v852 = vpop.f32.mrf.mxu0
  %v853 = vadd.f32 %v834, %v852
  %v854 = vpop.f32.mrf.mxu0
  %v855 = vadd.f32 %v836, %v854
  %856 = vmatmul.bf16.gmra.mxu0 %v822
  %v857 = vpop.f32.mrf.mxu0
  %v858 = vadd.f32 %v839, %v857
  %v859 = vpop.f32.mrf.mxu0
  %v860 = vadd.f32 %v841, %v859
  %861 = vdwg.mxu0
  %v862 = vadd.f32 %v714, %v853
  %v863 = vadd.f32 %v716, %v855
  %v864 = vadd.f32 %v719, %v858
  %v865 = vadd.f32 %v721, %v860
  %v866 = vld [vmem:[%s5] sm:$0x1]
  %v868 = vperm.slane %v866, 0
  %v870 = vmul.f32 %v862, %v868
  %v871 = vmul.f32 %v863, %v868
  %v872 = vmul.f32 %v864, %v868
  %v873 = vmul.f32 %v865, %v868
  %v874 = vld [vmem:[%s6] sm:$0x1]
  %v876 = vperm.slane %v874, 0
  %v878 = vadd.f32 %v870, %v876
  %v879 = vadd.f32 %v871, %v876
  %v880 = vadd.f32 %v872, %v876
  %v881 = vadd.f32 %v873, %v876
  %v882 = vmax.f32 %v878, 0.0
  %v883 = vmax.f32 %v879, 0.0
  %v884 = vmax.f32 %v880, 0.0
  %v885 = vmax.f32 %v881, 0.0
  %886 = vst [vmem:[%s7] sm:$0xff] %v882
  %887 = vst [vmem:[%s7 + $0x8] sm:$0xff] %v883
  %888 = vst [vmem:[%s7 + $0x10] sm:$0xff] %v884
  %889 = vst [vmem:[%s7 + $0x18] sm:$0xff] %v885
  // Predicated region
  $region30: #{conv_block_forward_nchw.1} parent=0 // pred_check
    _
  $region31: #{conv_block_forward_nchw.1} parent=0 // pred_check_branch
    %891 = sbr.rel (0) target = $region33
  $region32: #{conv_block_forward_nchw.1} parent=0 // pred_region
    _
  $region33: #{conv_block_forward_nchw.1} parent=0 // pred_fallthru
    _
  // Predicated region
  $region34: #{conv_block_forward_nchw.1} parent=0 // pred_check
    _
  $region35: #{conv_block_forward_nchw.1} parent=0 // pred_check_branch
    %893 = sbr.rel (0) target = $region37
  $region36: #{conv_block_forward_nchw.1} parent=0 // pred_region
    _
  $region37: #{conv_block_forward_nchw.1} parent=0 // pred_fallthru
    _

</llo_original>
